<compile_context>
chip_gen: v7x
topology: tpu7x:2x2x1
jax: 0.10.0
libtpu: 0.0.40
codegen_flags: <defaults>
</compile_context>

<pallas_src>
import functools
import math

import jax
import jax.numpy as jnp
from jax import lax
from jax.experimental import pallas as pl
from jax.experimental.pallas import tpu as pltpu

_LANES = 128
_MAX_BLOCK_ROWS = 4096                 # (4096, 128) f32 block = 2 MiB
_DEFAULT_MIN_PALLAS_BYTES = 1 << 20    # below ~1 MiB the custom-call overhead dominates
_INV_SQRT2 = 1.0 / math.sqrt(2.0)


# ----------------------------- activations ----------------------------------
def _relu(x):
    return jnp.maximum(x, 0.0)


def _leakyrelu(x):  # PyTorch F.leaky_relu default negative_slope = 0.01
    return jnp.where(x >= 0.0, x, 0.01 * x)


def _gelu(x):  # PyTorch F.gelu default: exact, erf-based
    return 0.5 * x * (1.0 + lax.erf(x * _INV_SQRT2))


def _tanh(x):
    return jnp.tanh(x)


_ACTS = {"relu": _relu, "leakyrelu": _leakyrelu, "gelu": _gelu, "tanh": _tanh}
# erf-based gelu stays in f32 for accuracy; the others are safe in native bf16.
_F32_ONLY = frozenset({"gelu"})
# Advisory per-element cost model so XLA can schedule neighbors around the call.
_FLOPS_PER_ELEM = {"relu": 1, "leakyrelu": 2, "gelu": 5, "tanh": 1}
_TRANS_PER_ELEM = {"relu": 0, "leakyrelu": 0, "gelu": 1, "tanh": 1}


# ----------------------------- kernel ----------------------------------------
def _elementwise_kernel(x_ref, o_ref, *, fn, compute_dtype):
    """Apply `fn` elementwise to one VMEM block in `compute_dtype`, cast back."""
    x = x_ref[...].astype(compute_dtype)
    o_ref[...] = fn(x).astype(o_ref.dtype)


# ----------------------------- tiling helpers --------------------------------
def _sublane_tile(dtype) -> int:
    # Packed sublane count: f32 -> 8, bf16/f16 -> 16, int8/fp8 -> 32.
    itemsize = jnp.dtype(dtype).itemsize
    return 8 * max(1, 4 // itemsize)


@functools.lru_cache(maxsize=1)
def _multi_tensorcore_chip() -> bool:
    """True on chips whose TensorCores share one device (v4/v5p megacore, v7x)."""
    try:
        kind = jax.devices()[0].device_kind.lower()
    except Exception:  # no devices / unusual backend -> conservative default
        return False
    return any(tag in kind for tag in ("v4", "v5p", "v7", "7x"))


def _choose_block_rows(rows: int, sub: int, multi_tc: bool) -> int:
    if rows <= sub or not multi_tc:
        # Single TensorCore (v5e/v6e): the grid is a serial loop, each extra
        # step costs ~0.35 us -> use the largest block, capped at 2 MiB f32.
        # block_rows == rows (full array dim) is legal even if not 8-aligned.
        return min(_MAX_BLOCK_ROWS, rows)
    # Multi-TC (v7x / megacore): even number of steps >= 2 so both cores get
    # equal work with dimension_semantics=("parallel",).
    steps = pl.cdiv(rows, _MAX_BLOCK_ROWS)
    steps = max(2, steps + (steps % 2))
    block_rows = (pl.cdiv(rows, steps) + sub - 1) // sub * sub  # sublane-aligned
    return max(sub, min(_MAX_BLOCK_ROWS, block_rows))


def _apply_jnp(x, fn, compute_dtype):
    return fn(x.astype(compute_dtype)).astype(x.dtype)


# ----------------------------- host wrapper ----------------------------------
def _nonlinear_pallas(x: jnp.ndarray, name: str, fn, min_pallas_bytes: int) -> jnp.ndarray:
    orig_shape, orig_dtype = x.shape, x.dtype
    total = x.size
    if total == 0:
        return x

    itemsize = int(jnp.dtype(orig_dtype).itemsize)
    # bf16 relu/leakyrelu/tanh run natively in bf16 (v6e/v7x VPU+EUP are
    # bf16-capable; on v5e Mosaic inserts the casts anyway). Exact-erf gelu
    # and all other dtypes compute in f32.
    compute_dtype = (orig_dtype
                     if (orig_dtype == jnp.bfloat16 and name not in _F32_ONLY)
                     else jnp.float32)

    # Small-input bypass (custom-call overhead dominates, and it blocks XLA
    # fusion) and ragged fallback (pad + slice would ~3x HBM traffic).
    # TODO(synk): handle the <128-element ragged tail in-kernel with a masked
    # partial block instead of falling back to XLA for the whole array.
    if total * itemsize < min_pallas_bytes or total % _LANES != 0:
        return _apply_jnp(x, fn, compute_dtype)

    rows = total // _LANES
    x2d = jnp.reshape(x, (rows, _LANES))

    sub = _sublane_tile(orig_dtype)
    block_rows = _choose_block_rows(rows, sub, _multi_tensorcore_chip())
    grid = (pl.cdiv(rows, block_rows),)

    out2d = pl.pallas_call(
        functools.partial(_elementwise_kernel, fn=fn, compute_dtype=compute_dtype),
        out_shape=jax.ShapeDtypeStruct((rows, _LANES), orig_dtype),
        grid_spec=pl.GridSpec(
            grid=grid,
            in_specs=[pl.BlockSpec((block_rows, _LANES), lambda i: (i, 0))],
            out_specs=pl.BlockSpec((block_rows, _LANES), lambda i: (i, 0)),
        ),
        # Output may reuse the input HBM buffer (true in-place under jit /
        # donation; XLA inserts a protective copy otherwise).
        input_output_aliases={0: 0},
        cost_estimate=pl.CostEstimate(
            flops=int(_FLOPS_PER_ELEM[name] * total),
            transcendentals=int(_TRANS_PER_ELEM[name] * total),
            bytes_accessed=int(2 * total * itemsize),
        ),
        compiler_params=pltpu.CompilerParams(
            dimension_semantics=("parallel",),
        ),
    )(x2d)

    return jnp.reshape(out2d, orig_shape)


# ----------------------------- module mirror ---------------------------------
class Nonlinear:
    """JAX/Pallas mirror of hot_pytorch Nonlinear: forward(x) = f(x)."""

    def __init__(self, f: str, skip_masking: bool = False,
                 min_pallas_bytes: int = _DEFAULT_MIN_PALLAS_BYTES):
        # skip_masking is accepted and unused, matching the PyTorch module.
        self._name = f
        self._fn = _ACTS[f]
        self._min_pallas_bytes = min_pallas_bytes

    def __call__(self, x: jnp.ndarray) -> jnp.ndarray:
        return _nonlinear_pallas(x, self._name, self._fn, self._min_pallas_bytes)


if __name__ == "__main__":
    key = jax.random.PRNGKey(0)
    # Small NCHW-style input, consistent with how Nonlinear is used on feature maps.
    x = jax.random.normal(key, (2, 4, 16, 16), dtype=jnp.float32)
    x_bf16 = x.astype(jnp.bfloat16)
    x_ragged = jax.random.normal(jax.random.PRNGKey(0), (3, 5, 7), dtype=jnp.float32)

    refs = {
        "relu": lambda v: jnp.maximum(v, 0.0),
        "leakyrelu": lambda v: jnp.where(v >= 0.0, v, 0.01 * v),
        "gelu": lambda v: jax.nn.gelu(v, approximate=False),
        "tanh": jnp.tanh,
    }

    for name, ref_fn in refs.items():
        # Force the Pallas kernel path (the default threshold would bypass
        # this tiny test input).
        mod_pallas = Nonlinear(name, min_pallas_bytes=0)
        out = jax.block_until_ready(mod_pallas(x))
        ref = ref_fn(x)
        assert out.shape == x.shape and out.dtype == x.dtype, name
        assert jnp.max(jnp.abs(out - ref)) < 1e-5, name

        # bf16 path (native bf16 compute for relu/leakyrelu/tanh, f32 for gelu).
        out_bf = jax.block_until_ready(mod_pallas(x_bf16))
        ref_bf = ref_fn(x_bf16.astype(jnp.float32)).astype(jnp.bfloat16)
        assert out_bf.shape == x_bf16.shape and out_bf.dtype == jnp.bfloat16, name
        err_bf = jnp.max(jnp.abs(out_bf.astype(jnp.float32) - ref_bf.astype(jnp.float32)))
        assert err_bf < 3e-2, (name, err_bf)

        # Default module: small-input bypass and ragged fallback (pure jnp).
        mod = Nonlinear(name)
        out_small = jax.block_until_ready(mod(x))
        assert jnp.max(jnp.abs(out_small - ref)) < 1e-5, name
        out_rag = jax.block_until_ready(mod(x_ragged))
        assert out_rag.shape == x_ragged.shape, name
        assert jnp.max(jnp.abs(out_rag - ref_fn(x_ragged))) < 1e-5, name

    print("KERNEL_OK")
</pallas_src>

<mosaic_0001>
module attributes {stable_mosaic.version = 11 : i64} {
  func.func @_elementwise_kernel(%arg0: i32, %arg1: memref<16x128xf32, #tpu.memory_space<vmem>>, %arg2: memref<16x128xf32, #tpu.memory_space<vmem>>) attributes {dimension_semantics = [#tpu.dimension_semantics<parallel>], iteration_bounds = array<i64: 1>, scalar_prefetch = 0 : i64, scratch_operands = 0 : i64, tpu.core_type = #tpu.core_type<tc>, window_params = [{transform_indices = @transform_0, window_bounds = array<i64: 16, 128>}, {transform_indices = @transform_1, window_bounds = array<i64: 16, 128>}]} {
    %c0 = arith.constant 0 : index
    %c0_0 = arith.constant 0 : index
    %0 = vector.load %arg1[%c0, %c0_0] : memref<16x128xf32, #tpu.memory_space<vmem>>, vector<16x128xf32>
    %cst = arith.constant 0.000000e+00 : f32
    %1 = vector.broadcast %cst : f32 to vector<16x128xf32>
    %2 = arith.maximumf %0, %1 : vector<16x128xf32>
    %c0_1 = arith.constant 0 : index
    %c0_2 = arith.constant 0 : index
    %3 = vector.load %arg2[%c0_1, %c0_2] : memref<16x128xf32, #tpu.memory_space<vmem>>, vector<16x128xf32>
    tpu.vector_store %arg2[%c0_1, %c0_2], %2 {strides = array<i32>} : memref<16x128xf32, #tpu.memory_space<vmem>>, vector<16x128xf32>,
    return
  }
  func.func @transform_0(%arg0: i32) -> (i32, i32) {
    %c0_i32 = arith.constant 0 : i32
    %c0_i32_0 = arith.constant 0 : i32
    return %arg0, %c0_i32 : i32, i32
  }
  func.func @transform_1(%arg0: i32) -> (i32, i32) {
    %c0_i32 = arith.constant 0 : i32
    %c0_i32_0 = arith.constant 0 : i32
    return %arg0, %c0_i32 : i32, i32
  }
}

</mosaic_0001>

<llo_original>
// kernel: tpu_custom_call.1
$region0: #{tpu_custom_call.1}
  #allocation0 [shape = 'u32[]', space=smem, size = 0x4, offset = 0x4, fixed_abs, tag = 'smem constant byte address 0x4 - core index']
  #allocation1 [shape = 'u32[144,128]{1,0:T(1,128)}', space=vmem, size = 0x12000, scoped, tag = 'internal scratch']
  %s0 = inlined_call_operand.hbm [shape: f32[16,128], index: 0, kind: input, shape index: {}, may-alias: {0,1}]
  %s1 = inlined_call_operand.hbm [shape: f32[16,128], index: 1, kind: output, shape index: {}, may-alias: {0,1}]
  %s2 = sld [smem:[#allocation0]]
  $region18: #{tpu_custom_call.1} parent=0
    _
  %s4 = ssub.s32 1, %s2
  %s5 = scalar_select 0, %s4, %s2
  $region1: #{tpu_custom_call.1} parent=0
    #allocation2 [shape = 'u8[8192]{0}', space=vmem, size = 0x2000, scoped, tag = 'input window, operand 0, single buffered']
    #allocation3 [shape = 's32[1]{0}', space=sflag, size = 0x4, scoped, tag = 'scoped memory for tpu_custom_call.1']
    #allocation4 [shape = 's32[1]{0}', space=sflag, size = 0x4, scoped, tag = 'scoped memory for tpu_custom_call.1']
    #allocation5 [shape = 'u8[8192]{0}', space=vmem, size = 0x2000, scoped, tag = 'output window, operand 0, single buffered']
    %6 = vsyncpa [#allocation3], 0
    %7 = vsyncpa [#allocation4], 0
    // Predicated region
    $region2: #{tpu_custom_call.1} parent=1 // pred_check
      _
    $region3: #{tpu_custom_call.1} parent=1 // pred_check_branch
      %9 = sbr.rel (0) target = $region5
    $region4: #{tpu_custom_call.1} parent=1 // pred_region
      %s11 = ssub.s32 256, 256
      %12 = vsyncadd [#allocation3], %s11
      %s13 = sshll.u32 [#allocation2], 4
      %s14 = int_to_ptr.vmem [resolvable:$true] %s13
      %19 = dma.hbm_to_vmem [thread:$0]  %s0, 256, %s14, [#allocation3], 128, 128, 8
    $region5: #{tpu_custom_call.1} parent=1 // pred_fallthru
      _
    // Predicated region
    $region6: #{tpu_custom_call.1} parent=1 // pred_check
      _
    $region7: #{tpu_custom_call.1} parent=1 // pred_check_branch
      %21 = sbr.rel (0) target = $region9
    $region8: #{tpu_custom_call.1} parent=1 // pred_region
      %22 = dma.done [#allocation3], 256
    $region9: #{tpu_custom_call.1} parent=1 // pred_fallthru
      _
    %v23 = vld [vmem:[#allocation2] sm:$0xff]
    %v24 = vld [vmem:[#allocation2 + $0x8] sm:$0xff]
    %v25 = vmax.f32 %v23, 0.0
    %v26 = vmax.f32 %v24, 0.0
    %27 = vst [vmem:[#allocation5] sm:$0xff] %v25
    %28 = vst [vmem:[#allocation5 + $0x8] sm:$0xff] %v26
    // Predicated region
    $region10: #{tpu_custom_call.1} parent=1 // pred_check
      _
    $region11: #{tpu_custom_call.1} parent=1 // pred_check_branch
      %30 = sbr.rel (0) target = $region13
    $region12: #{tpu_custom_call.1} parent=1 // pred_region
      %s32 = ssub.s32 256, 256
      %33 = vsyncadd [#allocation4], %s32
      %s34 = sshll.u32 [#allocation5], 4
      %s35 = int_to_ptr.vmem [resolvable:$true] %s34
      %40 = dma.vmem_to_hbm [thread:$0]  %s35, 256, %s1, [#allocation4], 128, 128, 8
    $region13: #{tpu_custom_call.1} parent=1 // pred_fallthru
      _
    // Predicated region
    $region14: #{tpu_custom_call.1} parent=1 // pred_check
      _
    $region15: #{tpu_custom_call.1} parent=1 // pred_check_branch
      %42 = sbr.rel (0) target = $region17
    $region16: #{tpu_custom_call.1} parent=1 // pred_region
      %43 = dma.done [#allocation4], 256
    $region17: #{tpu_custom_call.1} parent=1 // pred_fallthru
      _
    %44 = vsyncpa [#allocation3], 1
    %45 = vsyncpa [#allocation4], 1

</llo_original>
